<compile_context>
chip_gen: v7x
topology: tpu7x:2x2x1
jax: 0.10.0
libtpu: 0.0.40
codegen_flags: <defaults>
</compile_context>

<pallas_src>
import math

import jax
import jax.numpy as jnp
from jax.experimental import pallas as pl
from jax.experimental.pallas import tpu as pltpu

ALPHABET = 'abcdefghijklmnopqrstuvwxyzABCDEFGHIJKLMNOPQERSUVWXYZ'


# ---------------------------------------------------------------------------
# Formula construction (faithful port of TRL.__init__ einsum-string building)
# ---------------------------------------------------------------------------
def make_w_formula(n_rank):
    index = 0
    formula = ''
    for i in range(n_rank):
        formula += ALPHABET[index]
        index += 1
        if i == n_rank - 1:
            formula += ','
    core_str = formula[:len(formula) - 1]
    w_str = ''
    for l in range(n_rank):
        formula += core_str[l]
        formula += ALPHABET[index]
        w_str += ALPHABET[index]
        index += 1
        if l < n_rank - 1:
            formula += ','
        else:
            formula += '->'
    formula += w_str
    return formula


def make_out_formula(input_size, w_size, ignore_modes):
    index = 0
    formula = ''
    mul = ''
    out_str = ''
    extend_str = ''
    for i in range(len(input_size)):
        formula += ALPHABET[index]
        if i not in ignore_modes:
            mul += ALPHABET[index]
        else:
            extend_str += ALPHABET[index]
        index += 1
        if i == len(input_size) - 1:
            formula += ','
    formula += mul
    for i in range(len(mul), len(w_size)):
        formula += ALPHABET[index]
        out_str += ALPHABET[index]
        index += 1
        if i == len(w_size) - 1:
            formula += '->'
    formula += extend_str + out_str
    return formula


# ---------------------------------------------------------------------------
# Parameter construction (deterministic, mirrors TRL.init_param)
# ---------------------------------------------------------------------------
def make_trl_params(key, input_size, output, rank, ignore_modes=(0,), bias=True):
    input_size = tuple(input_size)
    output = tuple(output)
    rank = tuple(rank)
    new_size = [s for i, s in enumerate(input_size) if i not in ignore_modes]
    w_size = tuple(new_size) + output
    assert len(rank) == len(w_size), "rank must have one entry per mode of W"

    keys = jax.random.split(key, len(rank) + 2)
    core = 0.02 * jax.random.normal(keys[0], rank, dtype=jnp.float32)
    us = [0.02 * jax.random.normal(keys[1 + i], (rank[i], w_size[i]),
                                   dtype=jnp.float32)
          for i in range(len(rank))]
    b = (jax.random.uniform(keys[-1], output, dtype=jnp.float32,
                            minval=-1.0, maxval=1.0)
         if bias else jnp.zeros(output, dtype=jnp.float32))
    return core, us, b, w_size


# ---------------------------------------------------------------------------
# Pallas kernels
# ---------------------------------------------------------------------------
def trl_single_kernel(x_ref, w_ref, b_ref, o_ref):
    """Single-shot: whole (tiny) padded problem resident in VMEM; no grid."""
    o_ref[...] = (jnp.dot(x_ref[...], w_ref[...],
                          preferred_element_type=jnp.float32)
                  + b_ref[...]).astype(o_ref.dtype)


def trl_tiled_kernel_f32(x_ref, w_ref, b_ref, o_ref):
    """Tiled K-reduction, accumulating directly into the resident f32 output.

    Bias is folded into the k == 0 init (single write, no final RMW pass)."""
    @pl.when(pl.program_id(2) == 0)
    def _():
        o_ref[...] = jnp.zeros_like(o_ref) + b_ref[...]

    o_ref[...] += jnp.dot(x_ref[...], w_ref[...],
                          preferred_element_type=jnp.float32)


def trl_tiled_kernel_acc(x_ref, w_ref, b_ref, o_ref, acc_ref):
    """Tiled K-reduction with an f32 VMEM accumulator (non-f32 output dtypes)."""
    k = pl.program_id(2)

    @pl.when(k == 0)
    def _():
        acc_ref[...] = jnp.zeros_like(acc_ref) + b_ref[...]

    acc_ref[...] += jnp.dot(x_ref[...], w_ref[...],
                            preferred_element_type=jnp.float32)

    @pl.when(k == pl.num_programs(2) - 1)
    def _():
        o_ref[...] = acc_ref[...].astype(o_ref.dtype)


# ---------------------------------------------------------------------------
# Wrapper helpers
# ---------------------------------------------------------------------------
def _round_up(x, m):
    return ((x + m - 1) // m) * m


def _largest_dividing_tile(total, base, cap):
    """Largest multiple of `base` that divides `total` and is <= cap (>= base)."""
    best = base
    for d in range(1, total // base + 1):
        cand = base * d
        if cand > cap:
            break
        if total % cand == 0:
            best = cand
    return best


def _vmem_budget_bytes():
    """Generation-aware usable VMEM: ~96 MiB on v5e/v6e (128 MiB physical),
    ~48 MiB on v7x (64 MiB physical)."""
    try:
        cap = int(pltpu.get_tpu_info().vmem_capacity_bytes)
    except Exception:
        cap = 64 * 1024 * 1024
    return (cap * 3) // 4


# ---------------------------------------------------------------------------
# Wrapper
# ---------------------------------------------------------------------------
def trl_forward(x, core, us, b, output, ignore_modes=(0,),
                compute_dtype=jnp.bfloat16,
                single_shot_max_bytes=4 * 1024 * 1024):
    """TRL forward: reconstruct W from Tucker factors, contract with x, add bias.

    compute_dtype: MXU operand dtype (default bf16; pass jnp.float32 / None to
                   keep the input dtype).  Accumulation is always float32.
    """
    assert tuple(ignore_modes) == (0,), "kernel assumes batch (mode 0) is ignored"
    output = tuple(output)

    B = x.shape[0]
    K = int(math.prod(x.shape[1:]))
    O = int(math.prod(output))

    out_dtype = x.dtype
    cdt = jnp.dtype(compute_dtype) if compute_dtype is not None else jnp.dtype(x.dtype)
    esize = cdt.itemsize

    Op = _round_up(O, 128)     # lane-dense output
    Kp = _round_up(K, 128)     # contraction alignment (tiled path)
    Bp8 = _round_up(B, 8)      # sublane alignment

    # ---- Weight reconstruction (parameter glue, same as the PyTorch module).
    # Fold the O padding into the tiny output-mode factor so we never run an
    # extra pad/copy pass over the materialized (K, O) weight in HBM.
    # TODO(synk): at real model scale, contract through the Tucker factors
    # (x.U_c.U_h.U_w -> core -> U_o) instead of materializing the K*O weight.
    # TODO(synk): optional fp8 weight path for v7x (half the W DMA again).
    if len(output) == 1 and Op != O:
        w_ops = list(us[:-1]) + [jnp.pad(us[-1], ((0, 0), (0, Op - O)))]
    else:
        w_ops = list(us)
    w = jnp.einsum(make_w_formula(core.ndim), core, *w_ops)
    w_flat = w.reshape(K, -1).astype(cdt)
    if w_flat.shape[1] != Op:
        # Multi-mode outputs: padding cannot be folded into a single factor.
        w_flat = jnp.pad(w_flat, ((0, 0), (0, Op - w_flat.shape[1])))

    b_flat = b.reshape(1, O).astype(jnp.float32)
    if Op != O:
        b_flat = jnp.pad(b_flat, ((0, 0), (0, Op - O)))

    x_flat = x.reshape(B, K).astype(cdt)

    budget = _vmem_budget_bytes()

    # ---- Single-shot path: only genuinely tiny problems (no pipelining needed).
    single_bytes = esize * (Bp8 * K + K * Op) + 4 * (Op + Bp8 * Op)
    if single_bytes <= min(single_shot_max_bytes, budget // 2):
        x_p = x_flat if Bp8 == B else jnp.pad(x_flat, ((0, Bp8 - B), (0, 0)))
        out_p = pl.pallas_call(
            trl_single_kernel,
            out_shape=jax.ShapeDtypeStruct((Bp8, Op), out_dtype),
            compiler_params=pltpu.CompilerParams(vmem_limit_bytes=int(budget)),
        )(x_p, w_flat, b_flat)
        return out_p[:B, :O].reshape((B,) + output)

    # ---- Tiled path: (M, N, K) grid; parallel M/N, arbitrary (reduction) K.
    need_acc = jnp.dtype(out_dtype) != jnp.float32

    # M tile: multiple of 8, near-equal split so padding waste stays below tm.
    cap_m = 256
    num_m = -(-Bp8 // cap_m)
    tm = _round_up(-(-Bp8 // num_m), 8)
    Bp = num_m * tm

    # N tile: a 128-multiple that divides Op (lane-dense, no ragged last tile).
    tn = _largest_dividing_tile(Op, 128, 512)

    # v7x megacore: ensure at least one parallel axis has >= 2 blocks.
    if Bp // tm == 1 and Op // tn == 1 and Op >= 256:
        tn = _largest_dividing_tile(Op, 128, Op // 2)

    # K tile: biggest 128-multiple dividing Kp whose double-buffered footprint
    # (x + W tiles, bias, resident output, optional f32 acc) fits the budget.
    tk = 128
    for cand in (4096, 2048, 1024, 512, 256, 128):
        if Kp % cand != 0:
            continue
        fp = (2 * esize * (tm * cand + cand * tn)      # double-buffered x, W
              + 2 * 4 * tn                             # double-buffered bias
              + 4 * tm * tn                            # resident output
              + (4 * tm * tn if need_acc else 0))      # f32 accumulator scratch
        if fp <= budget - (2 << 20):
            tk = cand
            break

    x_p = x_flat
    if Bp != B or Kp != K:
        x_p = jnp.pad(x_flat, ((0, Bp - B), (0, Kp - K)))
    w_p = w_flat if Kp == K else jnp.pad(w_flat, ((0, Kp - K), (0, 0)))

    grid = (Bp // tm, Op // tn, Kp // tk)
    in_specs = [
        pl.BlockSpec((tm, tk), lambda i, j, k: (i, k)),   # x tile
        pl.BlockSpec((tk, tn), lambda i, j, k: (k, j)),   # W tile
        pl.BlockSpec((1, tn), lambda i, j, k: (0, j)),    # bias tile
    ]
    out_specs = pl.BlockSpec((tm, tn), lambda i, j, k: (i, j))
    cparams = pltpu.CompilerParams(
        dimension_semantics=("parallel", "parallel", "arbitrary"),
        vmem_limit_bytes=int(budget))

    if need_acc:
        out_p = pl.pallas_call(
            trl_tiled_kernel_acc,
            out_shape=jax.ShapeDtypeStruct((Bp, Op), out_dtype),
            grid_spec=pltpu.PrefetchScalarGridSpec(
                num_scalar_prefetch=0, grid=grid,
                in_specs=in_specs, out_specs=out_specs,
                scratch_shapes=[pltpu.VMEM((tm, tn), jnp.float32)]),
            compiler_params=cparams,
        )(x_p, w_p, b_flat)
    else:
        out_p = pl.pallas_call(
            trl_tiled_kernel_f32,
            out_shape=jax.ShapeDtypeStruct((Bp, Op), out_dtype),
            grid_spec=pltpu.PrefetchScalarGridSpec(
                num_scalar_prefetch=0, grid=grid,
                in_specs=in_specs, out_specs=out_specs),
            compiler_params=cparams,
        )(x_p, w_p, b_flat)

    # Strip padding; out shape = (ignored modes) + output == (B,) + output.
    return out_p[:B, :O].reshape((B,) + output)


# ---------------------------------------------------------------------------
# Pure-JAX reference (mirrors TRL.forward einsums exactly)
# ---------------------------------------------------------------------------
def trl_reference(x, core, us, b, output, input_size, ignore_modes=(0,)):
    w = jnp.einsum(make_w_formula(core.ndim), core, *us)
    out = jnp.einsum(make_out_formula(input_size, w.shape, ignore_modes), x, w)
    return out + b


if __name__ == "__main__":
    # Small shapes consistent with the module: x is NCHW, batch mode ignored.
    input_size = (2, 4, 16, 16)   # (B, C, H, W)
    output = (8,)                 # output feature dim
    rank = (3, 3, 3, 4)           # one rank per mode of W = (C, H, W, O)
    ignore_modes = (0,)

    key = jax.random.PRNGKey(0)
    kx, kp = jax.random.split(key)
    x = jax.random.normal(kx, input_size, dtype=jnp.float32)

    core, us, b, w_size = make_trl_params(kp, input_size, output, rank,
                                          ignore_modes=ignore_modes, bias=True)

    ref = jax.block_until_ready(
        trl_reference(x, core, us, b, output, input_size, ignore_modes))

    # Default path: bf16 MXU compute, f32 accumulation (single-shot on demo shapes).
    fwd = jax.jit(lambda x, core, us, b:
                  trl_forward(x, core, us, b, output, ignore_modes))
    out = jax.block_until_ready(fwd(x, core, us, b))
    assert out.shape == (input_size[0],) + output, out.shape
    assert jnp.allclose(out, ref, rtol=3e-2, atol=3e-2), \
        f"bf16 single-shot max abs err = {jnp.max(jnp.abs(out - ref))}"

    # f32 compute, single-shot: tight comparison against the reference.
    fwd32 = jax.jit(lambda x, core, us, b:
                    trl_forward(x, core, us, b, output, ignore_modes,
                                compute_dtype=jnp.float32))
    out32 = jax.block_until_ready(fwd32(x, core, us, b))
    assert jnp.allclose(out32, ref, rtol=1e-5, atol=1e-5), \
        f"f32 single-shot max abs err = {jnp.max(jnp.abs(out32 - ref))}"

    # Force the tiled (M, N, K) reduction path (f32 resident-output kernel).
    fwd_tiled = jax.jit(lambda x, core, us, b:
                        trl_forward(x, core, us, b, output, ignore_modes,
                                    compute_dtype=jnp.float32,
                                    single_shot_max_bytes=0))
    out_t = jax.block_until_ready(fwd_tiled(x, core, us, b))
    assert jnp.allclose(out_t, ref, rtol=1e-5, atol=1e-5), \
        f"tiled f32 max abs err = {jnp.max(jnp.abs(out_t - ref))}"

    # bf16 activations -> exercises the f32-accumulator tiled kernel (bf16 out).
    x_bf16 = x.astype(jnp.bfloat16)
    fwd_acc = jax.jit(lambda x, core, us, b:
                      trl_forward(x, core, us, b, output, ignore_modes,
                                  single_shot_max_bytes=0))
    out_acc = jax.block_until_ready(fwd_acc(x_bf16, core, us, b))
    assert out_acc.dtype == jnp.bfloat16, out_acc.dtype
    assert jnp.allclose(out_acc.astype(jnp.float32), ref, rtol=3e-2, atol=3e-2), \
        f"bf16 tiled max abs err = {jnp.max(jnp.abs(out_acc.astype(jnp.float32) - ref))}"

    print("KERNEL_OK")
</pallas_src>

<mosaic_0001>
module attributes {stable_mosaic.version = 11 : i64} {
  func.func @trl_single_kernel(%arg0: memref<8x1024xbf16, #tpu.memory_space<vmem>>, %arg1: memref<1024x128xbf16, #tpu.memory_space<vmem>>, %arg2: memref<1x128xf32, #tpu.memory_space<vmem>>, %arg3: memref<8x128xf32, #tpu.memory_space<vmem>>) attributes {dimension_semantics = [], scalar_prefetch = 0 : i64, scratch_operands = 0 : i64, tpu.core_type = #tpu.core_type<tc>} {
    %c0 = arith.constant 0 : index
    %c0_0 = arith.constant 0 : index
    %0 = vector.load %arg0[%c0, %c0_0] : memref<8x1024xbf16, #tpu.memory_space<vmem>>, vector<8x1024xbf16>
    %c0_1 = arith.constant 0 : index
    %c0_2 = arith.constant 0 : index
    %1 = vector.load %arg1[%c0_1, %c0_2] : memref<1024x128xbf16, #tpu.memory_space<vmem>>, vector<1024x128xbf16>
    %cst = arith.constant dense<0.000000e+00> : vector<8x128xf32>
    %2 = tpu.matmul %0, %1, %cst {dimension_numbers = #tpu.dot_dimension_numbers<[1], [0], [0], [1], [0, 0, 1, 1], [], []>} : vector<8x1024xbf16>, vector<1024x128xbf16>, vector<8x128xf32> -> vector<8x128xf32>
    %c0_3 = arith.constant 0 : index
    %c0_4 = arith.constant 0 : index
    %3 = vector.load %arg2[%c0_3, %c0_4] : memref<1x128xf32, #tpu.memory_space<vmem>>, vector<1x128xf32>
    %4 = vector.broadcast %3 : vector<1x128xf32> to vector<8x128xf32>
    %5 = arith.addf %2, %4 : vector<8x128xf32>
    %c0_5 = arith.constant 0 : index
    %c0_6 = arith.constant 0 : index
    %6 = vector.load %arg3[%c0_5, %c0_6] : memref<8x128xf32, #tpu.memory_space<vmem>>, vector<8x128xf32>
    tpu.vector_store %arg3[%c0_5, %c0_6], %5 {strides = array<i32>} : memref<8x128xf32, #tpu.memory_space<vmem>>, vector<8x128xf32>,
    return
  }
}

</mosaic_0001>

<llo_original>
// kernel: _lambda_.1
$region0: #{_lambda_.1}
  #allocation0 [shape = 'u32[]', space=smem, size = 0x4, offset = 0x4, fixed_abs, tag = 'smem constant byte address 0x4 - core index']
  #allocation1 [shape = 'u32[144,128]{1,0:T(1,128)}', space=vmem, size = 0x12000, scoped, tag = 'internal scratch']
  %s0 = inlined_call_operand.vmem [shape: bf16[8,1024], index: 0, kind: input, shape index: {}]
  %s1 = inlined_call_operand.vmem [shape: bf16[1024,128], index: 1, kind: input, shape index: {}]
  %s2 = inlined_call_operand.vmem [shape: f32[1,128], index: 2, kind: input, shape index: {}]
  %s3 = inlined_call_operand.vmem [shape: f32[8,128], index: 3, kind: output, shape index: {}]
  %s4 = sld [smem:[#allocation0]]
  $region22: #{_lambda_.1} parent=0
    _
  %s6 = ssub.s32 1, %s4
  %s7 = scalar_select 0, %s6, %s4
  // Predicated region
  $region2: #{_lambda_.1} parent=0 // pred_check
    _
  $region3: #{_lambda_.1} parent=0 // pred_check_branch
    %9 = sbr.rel (0) target = $region5
  $region4: #{_lambda_.1} parent=0 // pred_region
    _
  $region5: #{_lambda_.1} parent=0 // pred_fallthru
    _
  // Predicated region
  $region6: #{_lambda_.1} parent=0 // pred_check
    _
  $region7: #{_lambda_.1} parent=0 // pred_check_branch
    %11 = sbr.rel (0) target = $region9
  $region8: #{_lambda_.1} parent=0 // pred_region
    _
  $region9: #{_lambda_.1} parent=0 // pred_fallthru
    _
  // Predicated region
  $region10: #{_lambda_.1} parent=0 // pred_check
    _
  $region11: #{_lambda_.1} parent=0 // pred_check_branch
    %13 = sbr.rel (0) target = $region13
  $region12: #{_lambda_.1} parent=0 // pred_region
    _
  $region13: #{_lambda_.1} parent=0 // pred_fallthru
    _
  %v15 = vld [vmem:[%s0] sm:$0xff]
  %v16 = vld [vmem:[%s0 + $0x8] sm:$0xff]
  %v17 = vld [vmem:[%s0 + $0x10] sm:$0xff]
  %v18 = vld [vmem:[%s0 + $0x18] sm:$0xff]
  %v19 = vld [vmem:[%s1] sm:$0xf]
  %v20 = vld [vmem:[%s1 + $0x4] sm:$0xf]
  %v21 = vld [vmem:[%s1 + $0x8] sm:$0xf]
  %v22 = vld [vmem:[%s1 + $0xc] sm:$0xf]
  %v23 = vld [vmem:[%s1 + $0x10] sm:$0xf]
  %v24 = vld [vmem:[%s1 + $0x14] sm:$0xf]
  %v25 = vld [vmem:[%s1 + $0x18] sm:$0xf]
  %v26 = vld [vmem:[%s1 + $0x1c] sm:$0xf]
  %v27 = vld [vmem:[%s1 + $0x20] sm:$0xf]
  %v28 = vld [vmem:[%s1 + $0x24] sm:$0xf]
  %v29 = vld [vmem:[%s1 + $0x28] sm:$0xf]
  %v30 = vld [vmem:[%s1 + $0x2c] sm:$0xf]
  %v31 = vld [vmem:[%s1 + $0x30] sm:$0xf]
  %v32 = vld [vmem:[%s1 + $0x34] sm:$0xf]
  %v33 = vld [vmem:[%s1 + $0x38] sm:$0xf]
  %v34 = vld [vmem:[%s1 + $0x3c] sm:$0xf]
  %v35 = vld [vmem:[%s1 + $0x40] sm:$0xf]
  %v36 = vld [vmem:[%s1 + $0x44] sm:$0xf]
  %v37 = vld [vmem:[%s1 + $0x48] sm:$0xf]
  %v38 = vld [vmem:[%s1 + $0x4c] sm:$0xf]
  %v39 = vld [vmem:[%s1 + $0x50] sm:$0xf]
  %v40 = vld [vmem:[%s1 + $0x54] sm:$0xf]
  %v41 = vld [vmem:[%s1 + $0x58] sm:$0xf]
  %v42 = vld [vmem:[%s1 + $0x5c] sm:$0xf]
  %v43 = vld [vmem:[%s1 + $0x60] sm:$0xf]
  %v44 = vld [vmem:[%s1 + $0x64] sm:$0xf]
  %v45 = vld [vmem:[%s1 + $0x68] sm:$0xf]
  %v46 = vld [vmem:[%s1 + $0x6c] sm:$0xf]
  %v47 = vld [vmem:[%s1 + $0x70] sm:$0xf]
  %v48 = vld [vmem:[%s1 + $0x74] sm:$0xf]
  %v49 = vld [vmem:[%s1 + $0x78] sm:$0xf]
  %v50 = vld [vmem:[%s1 + $0x7c] sm:$0xf]
  %v51 = vld [vmem:[%s1 + $0x80] sm:$0xf]
  %v52 = vld [vmem:[%s1 + $0x84] sm:$0xf]
  %v53 = vld [vmem:[%s1 + $0x88] sm:$0xf]
  %v54 = vld [vmem:[%s1 + $0x8c] sm:$0xf]
  %v55 = vld [vmem:[%s1 + $0x90] sm:$0xf]
  %v56 = vld [vmem:[%s1 + $0x94] sm:$0xf]
  %v57 = vld [vmem:[%s1 + $0x98] sm:$0xf]
  %v58 = vld [vmem:[%s1 + $0x9c] sm:$0xf]
  %v59 = vld [vmem:[%s1 + $0xa0] sm:$0xf]
  %v60 = vld [vmem:[%s1 + $0xa4] sm:$0xf]
  %v61 = vld [vmem:[%s1 + $0xa8] sm:$0xf]
  %v62 = vld [vmem:[%s1 + $0xac] sm:$0xf]
  %v63 = vld [vmem:[%s1 + $0xb0] sm:$0xf]
  %v64 = vld [vmem:[%s1 + $0xb4] sm:$0xf]
  %v65 = vld [vmem:[%s1 + $0xb8] sm:$0xf]
  %v66 = vld [vmem:[%s1 + $0xbc] sm:$0xf]
  %v67 = vld [vmem:[%s1 + $0xc0] sm:$0xf]
  %v68 = vld [vmem:[%s1 + $0xc4] sm:$0xf]
  %v69 = vld [vmem:[%s1 + $0xc8] sm:$0xf]
  %v70 = vld [vmem:[%s1 + $0xcc] sm:$0xf]
  %v71 = vld [vmem:[%s1 + $0xd0] sm:$0xf]
  %v72 = vld [vmem:[%s1 + $0xd4] sm:$0xf]
  %v73 = vld [vmem:[%s1 + $0xd8] sm:$0xf]
  %v74 = vld [vmem:[%s1 + $0xdc] sm:$0xf]
  %v75 = vld [vmem:[%s1 + $0xe0] sm:$0xf]
  %v76 = vld [vmem:[%s1 + $0xe4] sm:$0xf]
  %v77 = vld [vmem:[%s1 + $0xe8] sm:$0xf]
  %v78 = vld [vmem:[%s1 + $0xec] sm:$0xf]
  %v79 = vld [vmem:[%s1 + $0xf0] sm:$0xf]
  %v80 = vld [vmem:[%s1 + $0xf4] sm:$0xf]
  %v81 = vld [vmem:[%s1 + $0xf8] sm:$0xf]
  %v82 = vld [vmem:[%s1 + $0xfc] sm:$0xf]
  %v83 = vld [vmem:[%s1 + $0x100] sm:$0xf]
  %v84 = vld [vmem:[%s1 + $0x104] sm:$0xf]
  %v85 = vld [vmem:[%s1 + $0x108] sm:$0xf]
  %v86 = vld [vmem:[%s1 + $0x10c] sm:$0xf]
  %v87 = vld [vmem:[%s1 + $0x110] sm:$0xf]
  %v88 = vld [vmem:[%s1 + $0x114] sm:$0xf]
  %v89 = vld [vmem:[%s1 + $0x118] sm:$0xf]
  %v90 = vld [vmem:[%s1 + $0x11c] sm:$0xf]
  %v91 = vld [vmem:[%s1 + $0x120] sm:$0xf]
  %v92 = vld [vmem:[%s1 + $0x124] sm:$0xf]
  %v93 = vld [vmem:[%s1 + $0x128] sm:$0xf]
  %v94 = vld [vmem:[%s1 + $0x12c] sm:$0xf]
  %v95 = vld [vmem:[%s1 + $0x130] sm:$0xf]
  %v96 = vld [vmem:[%s1 + $0x134] sm:$0xf]
  %v97 = vld [vmem:[%s1 + $0x138] sm:$0xf]
  %v98 = vld [vmem:[%s1 + $0x13c] sm:$0xf]
  %v99 = vld [vmem:[%s1 + $0x140] sm:$0xf]
  %v100 = vld [vmem:[%s1 + $0x144] sm:$0xf]
  %v101 = vld [vmem:[%s1 + $0x148] sm:$0xf]
  %v102 = vld [vmem:[%s1 + $0x14c] sm:$0xf]
  %v103 = vld [vmem:[%s1 + $0x150] sm:$0xf]
  %v104 = vld [vmem:[%s1 + $0x154] sm:$0xf]
  %v105 = vld [vmem:[%s1 + $0x158] sm:$0xf]
  %v106 = vld [vmem:[%s1 + $0x15c] sm:$0xf]
  %v107 = vld [vmem:[%s1 + $0x160] sm:$0xf]
  %v108 = vld [vmem:[%s1 + $0x164] sm:$0xf]
  %v109 = vld [vmem:[%s1 + $0x168] sm:$0xf]
  %v110 = vld [vmem:[%s1 + $0x16c] sm:$0xf]
  %v111 = vld [vmem:[%s1 + $0x170] sm:$0xf]
  %v112 = vld [vmem:[%s1 + $0x174] sm:$0xf]
  %v113 = vld [vmem:[%s1 + $0x178] sm:$0xf]
  %v114 = vld [vmem:[%s1 + $0x17c] sm:$0xf]
  %v115 = vld [vmem:[%s1 + $0x180] sm:$0xf]
  %v116 = vld [vmem:[%s1 + $0x184] sm:$0xf]
  %v117 = vld [vmem:[%s1 + $0x188] sm:$0xf]
  %v118 = vld [vmem:[%s1 + $0x18c] sm:$0xf]
  %v119 = vld [vmem:[%s1 + $0x190] sm:$0xf]
  %v120 = vld [vmem:[%s1 + $0x194] sm:$0xf]
  %v121 = vld [vmem:[%s1 + $0x198] sm:$0xf]
  %v122 = vld [vmem:[%s1 + $0x19c] sm:$0xf]
  %v123 = vld [vmem:[%s1 + $0x1a0] sm:$0xf]
  %v124 = vld [vmem:[%s1 + $0x1a4] sm:$0xf]
  %v125 = vld [vmem:[%s1 + $0x1a8] sm:$0xf]
  %v126 = vld [vmem:[%s1 + $0x1ac] sm:$0xf]
  %v127 = vld [vmem:[%s1 + $0x1b0] sm:$0xf]
  %v128 = vld [vmem:[%s1 + $0x1b4] sm:$0xf]
  %v129 = vld [vmem:[%s1 + $0x1b8] sm:$0xf]
  %v130 = vld [vmem:[%s1 + $0x1bc] sm:$0xf]
  %v131 = vld [vmem:[%s1 + $0x1c0] sm:$0xf]
  %v132 = vld [vmem:[%s1 + $0x1c4] sm:$0xf]
  %v133 = vld [vmem:[%s1 + $0x1c8] sm:$0xf]
  %v134 = vld [vmem:[%s1 + $0x1cc] sm:$0xf]
  %v135 = vld [vmem:[%s1 + $0x1d0] sm:$0xf]
  %v136 = vld [vmem:[%s1 + $0x1d4] sm:$0xf]
  %v137 = vld [vmem:[%s1 + $0x1d8] sm:$0xf]
  %v138 = vld [vmem:[%s1 + $0x1dc] sm:$0xf]
  %v139 = vld [vmem:[%s1 + $0x1e0] sm:$0xf]
  %v140 = vld [vmem:[%s1 + $0x1e4] sm:$0xf]
  %v141 = vld [vmem:[%s1 + $0x1e8] sm:$0xf]
  %v142 = vld [vmem:[%s1 + $0x1ec] sm:$0xf]
  %v143 = vld [vmem:[%s1 + $0x1f0] sm:$0xf]
  %v144 = vld [vmem:[%s1 + $0x1f4] sm:$0xf]
  %v145 = vld [vmem:[%s1 + $0x1f8] sm:$0xf]
  %v146 = vld [vmem:[%s1 + $0x1fc] sm:$0xf]
  %v147 = vld [vmem:[%s2] sm:$0x1]
  %v149 = vlaneseq
  %v150 = vshrl.u32 %v149, 7
  %v151 = vsub.s32 0, %v150
  %v152 = vrot.slane %v147, %v151
  %v158 = vunpack.c.l.b16 %v15
  %v159 = vunpack.c.h.b16 %v15
  %v160 = vunpack.c.l.b16 %v16
  %v161 = vunpack.c.h.b16 %v16
  %v162 = vunpack.c.l.b16 %v17
  %v163 = vunpack.c.h.b16 %v17
  %v164 = vunpack.c.l.b16 %v18
  %v165 = vunpack.c.h.b16 %v18
  %v166 = vpack.c.b16 %v158, %v158
  %v167 = vpack.c.b16 %v159, %v159
  %v168 = vpack.c.b16 %v160, %v160
  %v169 = vpack.c.b16 %v161, %v161
  %v170 = vpack.c.b16 %v162, %v162
  %v171 = vpack.c.b16 %v163, %v163
  %v172 = vpack.c.b16 %v164, %v164
  %v173 = vpack.c.b16 %v165, %v165
  %v310 = vunpack.c.l.b16 %v19
  %v311 = vunpack.c.l.b16 %v20
  %v312 = vunpack.c.l.b16 %v21
  %v313 = vunpack.c.l.b16 %v22
  %v314 = vunpack.c.l.b16 %v23
  %v315 = vunpack.c.l.b16 %v24
  %v316 = vunpack.c.l.b16 %v25
  %v317 = vunpack.c.l.b16 %v26
  %v318 = vunpack.c.l.b16 %v27
  %v319 = vunpack.c.l.b16 %v28
  %v320 = vunpack.c.l.b16 %v29
  %v321 = vunpack.c.l.b16 %v30
  %v322 = vunpack.c.l.b16 %v31
  %v323 = vunpack.c.l.b16 %v32
  %v324 = vunpack.c.l.b16 %v33
  %v325 = vunpack.c.l.b16 %v34
  %v326 = vunpack.c.l.b16 %v35
  %v327 = vunpack.c.l.b16 %v36
  %v328 = vunpack.c.l.b16 %v37
  %v329 = vunpack.c.l.b16 %v38
  %v330 = vunpack.c.l.b16 %v39
  %v331 = vunpack.c.l.b16 %v40
  %v332 = vunpack.c.l.b16 %v41
  %v333 = vunpack.c.l.b16 %v42
  %v334 = vunpack.c.l.b16 %v43
  %v335 = vunpack.c.l.b16 %v44
  %v336 = vunpack.c.l.b16 %v45
  %v337 = vunpack.c.l.b16 %v46
  %v338 = vunpack.c.l.b16 %v47
  %v339 = vunpack.c.l.b16 %v48
  %v340 = vunpack.c.l.b16 %v49
  %v341 = vunpack.c.l.b16 %v50
  %v342 = vunpack.c.l.b16 %v51
  %v343 = vunpack.c.l.b16 %v52
  %v344 = vunpack.c.l.b16 %v53
  %v345 = vunpack.c.l.b16 %v54
  %v346 = vunpack.c.l.b16 %v55
  %v347 = vunpack.c.l.b16 %v56
  %v348 = vunpack.c.l.b16 %v57
  %v349 = vunpack.c.l.b16 %v58
  %v350 = vunpack.c.l.b16 %v59
  %v351 = vunpack.c.l.b16 %v60
  %v352 = vunpack.c.l.b16 %v61
  %v353 = vunpack.c.l.b16 %v62
  %v354 = vunpack.c.l.b16 %v63
  %v355 = vunpack.c.l.b16 %v64
  %v356 = vunpack.c.l.b16 %v65
  %v357 = vunpack.c.l.b16 %v66
  %v358 = vunpack.c.l.b16 %v67
  %v359 = vunpack.c.l.b16 %v68
  %v360 = vunpack.c.l.b16 %v69
  %v361 = vunpack.c.l.b16 %v70
  %v362 = vunpack.c.l.b16 %v71
  %v363 = vunpack.c.l.b16 %v72
  %v364 = vunpack.c.l.b16 %v73
  %v365 = vunpack.c.l.b16 %v74
  %v366 = vunpack.c.l.b16 %v75
  %v367 = vunpack.c.l.b16 %v76
  %v368 = vunpack.c.l.b16 %v77
  %v369 = vunpack.c.l.b16 %v78
  %v370 = vunpack.c.l.b16 %v79
  %v371 = vunpack.c.l.b16 %v80
  %v372 = vunpack.c.l.b16 %v81
  %v373 = vunpack.c.l.b16 %v82
  %v374 = vunpack.c.l.b16 %v83
  %v375 = vunpack.c.l.b16 %v84
  %v376 = vunpack.c.l.b16 %v85
  %v377 = vunpack.c.l.b16 %v86
  %v378 = vunpack.c.l.b16 %v87
  %v379 = vunpack.c.l.b16 %v88
  %v380 = vunpack.c.l.b16 %v89
  %v381 = vunpack.c.l.b16 %v90
  %v382 = vunpack.c.l.b16 %v91
  %v383 = vunpack.c.l.b16 %v92
  %v384 = vunpack.c.l.b16 %v93
  %v385 = vunpack.c.l.b16 %v94
  %v386 = vunpack.c.l.b16 %v95
  %v387 = vunpack.c.l.b16 %v96
  %v388 = vunpack.c.l.b16 %v97
  %v389 = vunpack.c.l.b16 %v98
  %v390 = vunpack.c.l.b16 %v99
  %v391 = vunpack.c.l.b16 %v100
  %v392 = vunpack.c.l.b16 %v101
  %v393 = vunpack.c.l.b16 %v102
  %v394 = vunpack.c.l.b16 %v103
  %v395 = vunpack.c.l.b16 %v104
  %v396 = vunpack.c.l.b16 %v105
  %v397 = vunpack.c.l.b16 %v106
  %v398 = vunpack.c.l.b16 %v107
  %v399 = vunpack.c.l.b16 %v108
  %v400 = vunpack.c.l.b16 %v109
  %v401 = vunpack.c.l.b16 %v110
  %v402 = vunpack.c.l.b16 %v111
  %v403 = vunpack.c.l.b16 %v112
  %v404 = vunpack.c.l.b16 %v113
  %v405 = vunpack.c.l.b16 %v114
  %v406 = vunpack.c.l.b16 %v115
  %v407 = vunpack.c.l.b16 %v116
  %v408 = vunpack.c.l.b16 %v117
  %v409 = vunpack.c.l.b16 %v118
  %v410 = vunpack.c.l.b16 %v119
  %v411 = vunpack.c.l.b16 %v120
  %v412 = vunpack.c.l.b16 %v121
  %v413 = vunpack.c.l.b16 %v122
  %v414 = vunpack.c.l.b16 %v123
  %v415 = vunpack.c.l.b16 %v124
  %v416 = vunpack.c.l.b16 %v125
  %v417 = vunpack.c.l.b16 %v126
  %v418 = vunpack.c.l.b16 %v127
  %v419 = vunpack.c.l.b16 %v128
  %v420 = vunpack.c.l.b16 %v129
  %v421 = vunpack.c.l.b16 %v130
  %v422 = vunpack.c.l.b16 %v131
  %v423 = vunpack.c.l.b16 %v132
  %v424 = vunpack.c.l.b16 %v133
  %v425 = vunpack.c.l.b16 %v134
  %v426 = vunpack.c.l.b16 %v135
  %v427 = vunpack.c.l.b16 %v136
  %v428 = vunpack.c.l.b16 %v137
  %v429 = vunpack.c.l.b16 %v138
  %v430 = vunpack.c.l.b16 %v139
  %v431 = vunpack.c.l.b16 %v140
  %v432 = vunpack.c.l.b16 %v141
  %v433 = vunpack.c.l.b16 %v142
  %v434 = vunpack.c.l.b16 %v143
  %v435 = vunpack.c.l.b16 %v144
  %v436 = vunpack.c.l.b16 %v145
  %v437 = vunpack.c.l.b16 %v146
  %v438 = vpack.c.b16 %v311, %v310
  %v439 = vpack.c.b16 %v313, %v312
  %v440 = vpack.c.b16 %v315, %v314
  %v441 = vpack.c.b16 %v317, %v316
  %v442 = vpack.c.b16 %v319, %v318
  %v443 = vpack.c.b16 %v321, %v320
  %v444 = vpack.c.b16 %v323, %v322
  %v445 = vpack.c.b16 %v325, %v324
  %v446 = vpack.c.b16 %v327, %v326
  %v447 = vpack.c.b16 %v329, %v328
  %v448 = vpack.c.b16 %v331, %v330
  %v449 = vpack.c.b16 %v333, %v332
  %v450 = vpack.c.b16 %v335, %v334
  %v451 = vpack.c.b16 %v337, %v336
  %v452 = vpack.c.b16 %v339, %v338
  %v453 = vpack.c.b16 %v341, %v340
  %v454 = vpack.c.b16 %v343, %v342
  %v455 = vpack.c.b16 %v345, %v344
  %v456 = vpack.c.b16 %v347, %v346
  %v457 = vpack.c.b16 %v349, %v348
  %v458 = vpack.c.b16 %v351, %v350
  %v459 = vpack.c.b16 %v353, %v352
  %v460 = vpack.c.b16 %v355, %v354
  %v461 = vpack.c.b16 %v357, %v356
  %v462 = vpack.c.b16 %v359, %v358
  %v463 = vpack.c.b16 %v361, %v360
  %v464 = vpack.c.b16 %v363, %v362
  %v465 = vpack.c.b16 %v365, %v364
  %v466 = vpack.c.b16 %v367, %v366
  %v467 = vpack.c.b16 %v369, %v368
  %v468 = vpack.c.b16 %v371, %v370
  %v469 = vpack.c.b16 %v373, %v372
  %v470 = vpack.c.b16 %v375, %v374
  %v471 = vpack.c.b16 %v377, %v376
  %v472 = vpack.c.b16 %v379, %v378
  %v473 = vpack.c.b16 %v381, %v380
  %v474 = vpack.c.b16 %v383, %v382
  %v475 = vpack.c.b16 %v385, %v384
  %v476 = vpack.c.b16 %v387, %v386
  %v477 = vpack.c.b16 %v389, %v388
  %v478 = vpack.c.b16 %v391, %v390
  %v479 = vpack.c.b16 %v393, %v392
  %v480 = vpack.c.b16 %v395, %v394
  %v481 = vpack.c.b16 %v397, %v396
  %v482 = vpack.c.b16 %v399, %v398
  %v483 = vpack.c.b16 %v401, %v400
  %v484 = vpack.c.b16 %v403, %v402
  %v485 = vpack.c.b16 %v405, %v404
  %v486 = vpack.c.b16 %v407, %v406
  %v487 = vpack.c.b16 %v409, %v408
  %v488 = vpack.c.b16 %v411, %v410
  %v489 = vpack.c.b16 %v413, %v412
  %v490 = vpack.c.b16 %v415, %v414
  %v491 = vpack.c.b16 %v417, %v416
  %v492 = vpack.c.b16 %v419, %v418
  %v493 = vpack.c.b16 %v421, %v420
  %v494 = vpack.c.b16 %v423, %v422
  %v495 = vpack.c.b16 %v425, %v424
  %v496 = vpack.c.b16 %v427, %v426
  %v497 = vpack.c.b16 %v429, %v428
  %v498 = vpack.c.b16 %v431, %v430
  %v499 = vpack.c.b16 %v433, %v432
  %v500 = vpack.c.b16 %v435, %v434
  %v501 = vpack.c.b16 %v437, %v436
  %566 = vmatprep.subr.bf16.mxu0 0
  %567 = vmatpush1.bf16.msra.mxu0 %v438
  %568 = vmatprep.subr.bf16.mxu0 0
  %569 = vmatpush1.bf16.msra.mxu0 %v439
  %570 = vmatprep.subr.bf16.mxu0 0
  %571 = vmatpush1.bf16.msra.mxu0 %v440
  %572 = vmatprep.subr.bf16.mxu0 0
  %573 = vmatpush1.bf16.msra.mxu0 %v441
  %574 = vmatprep.subr.bf16.mxu0 0
  %575 = vmatpush1.bf16.msra.mxu0 %v442
  %576 = vmatprep.subr.bf16.mxu0 0
  %577 = vmatpush1.bf16.msra.mxu0 %v443
  %578 = vmatprep.subr.bf16.mxu0 0
  %579 = vmatpush1.bf16.msra.mxu0 %v444
  %580 = vmatprep.subr.bf16.mxu0 0
  %581 = vmatpush1.bf16.msra.mxu0 %v445
  %582 = vmatprep.subr.bf16.mxu0 0
  %583 = vmatpush1.bf16.msra.mxu0 %v446
  %584 = vmatprep.subr.bf16.mxu0 0
  %585 = vmatpush1.bf16.msra.mxu0 %v447
  %586 = vmatprep.subr.bf16.mxu0 0
  %587 = vmatpush1.bf16.msra.mxu0 %v448
  %588 = vmatprep.subr.bf16.mxu0 0
  %589 = vmatpush1.bf16.msra.mxu0 %v449
  %590 = vmatprep.subr.bf16.mxu0 0
  %591 = vmatpush1.bf16.msra.mxu0 %v450
  %592 = vmatprep.subr.bf16.mxu0 0
  %593 = vmatpush1.bf16.msra.mxu0 %v451
  %594 = vmatprep.subr.bf16.mxu0 0
  %595 = vmatpush1.bf16.msra.mxu0 %v452
  %596 = vmatprep.subr.bf16.mxu0 0
  %597 = vmatpush1.bf16.msra.mxu0 %v453
  %598 = vmatprep.mubr.bf16.mxu0 %v167
  %599 = vmatmul.mubr.bf16.gmra.mrb[0].mxu0 %v166
  %v600 = vpop.f32.mrb[0].mxu0
  %v601 = vadd.f32 %v152, %v600
  %v602 = vpop.f32.mrb[0].mxu0
  %v603 = vpop.f32.mrb[0].mxu0
  %v604 = vpop.f32.mrb[0].mxu0
  %605 = vdwg.mxu0
  %606 = vmatprep.subr.bf16.mxu0 0
  %607 = vmatpush1.bf16.msra.mxu0 %v454
  %608 = vmatprep.subr.bf16.mxu0 0
  %609 = vmatpush1.bf16.msra.mxu0 %v455
  %610 = vmatprep.subr.bf16.mxu0 0
  %611 = vmatpush1.bf16.msra.mxu0 %v456
  %612 = vmatprep.subr.bf16.mxu0 0
  %613 = vmatpush1.bf16.msra.mxu0 %v457
  %614 = vmatprep.subr.bf16.mxu0 0
  %615 = vmatpush1.bf16.msra.mxu0 %v458
  %616 = vmatprep.subr.bf16.mxu0 0
  %617 = vmatpush1.bf16.msra.mxu0 %v459
  %618 = vmatprep.subr.bf16.mxu0 0
  %619 = vmatpush1.bf16.msra.mxu0 %v460
  %620 = vmatprep.subr.bf16.mxu0 0
  %621 = vmatpush1.bf16.msra.mxu0 %v461
  %622 = vmatprep.subr.bf16.mxu0 0
  %623 = vmatpush1.bf16.msra.mxu0 %v462
  %624 = vmatprep.subr.bf16.mxu0 0
  %625 = vmatpush1.bf16.msra.mxu0 %v463
  %626 = vmatprep.subr.bf16.mxu0 0
  %627 = vmatpush1.bf16.msra.mxu0 %v464
  %628 = vmatprep.subr.bf16.mxu0 0
  %629 = vmatpush1.bf16.msra.mxu0 %v465
  %630 = vmatprep.subr.bf16.mxu0 0
  %631 = vmatpush1.bf16.msra.mxu0 %v466
  %632 = vmatprep.subr.bf16.mxu0 0
  %633 = vmatpush1.bf16.msra.mxu0 %v467
  %634 = vmatprep.subr.bf16.mxu0 0
  %635 = vmatpush1.bf16.msra.mxu0 %v468
  %636 = vmatprep.subr.bf16.mxu0 0
  %637 = vmatpush1.bf16.msra.mxu0 %v469
  %638 = vmatprep.mubr.bf16.mxu0 %v169
  %639 = vmatmul.mubr.bf16.gmra.mrb[0].mxu0 %v168
  %v640 = vpop.f32.mrb[0].mxu0
  %v641 = vadd.f32 %v601, %v640
  %v642 = vpop.f32.mrb[0].mxu0
  %v643 = vpop.f32.mrb[0].mxu0
  %v644 = vpop.f32.mrb[0].mxu0
  %645 = vdwg.mxu0
  %646 = vmatprep.subr.bf16.mxu0 0
  %647 = vmatpush1.bf16.msra.mxu0 %v470
  %648 = vmatprep.subr.bf16.mxu0 0
  %649 = vmatpush1.bf16.msra.mxu0 %v471
  %650 = vmatprep.subr.bf16.mxu0 0
  %651 = vmatpush1.bf16.msra.mxu0 %v472
  %652 = vmatprep.subr.bf16.mxu0 0
  %653 = vmatpush1.bf16.msra.mxu0 %v473
  %654 = vmatprep.subr.bf16.mxu0 0
  %655 = vmatpush1.bf16.msra.mxu0 %v474
  %656 = vmatprep.subr.bf16.mxu0 0
  %657 = vmatpush1.bf16.msra.mxu0 %v475
  %658 = vmatprep.subr.bf16.mxu0 0
  %659 = vmatpush1.bf16.msra.mxu0 %v476
  %660 = vmatprep.subr.bf16.mxu0 0
  %661 = vmatpush1.bf16.msra.mxu0 %v477
  %662 = vmatprep.subr.bf16.mxu0 0
  %663 = vmatpush1.bf16.msra.mxu0 %v478
  %664 = vmatprep.subr.bf16.mxu0 0
  %665 = vmatpush1.bf16.msra.mxu0 %v479
  %666 = vmatprep.subr.bf16.mxu0 0
  %667 = vmatpush1.bf16.msra.mxu0 %v480
  %668 = vmatprep.subr.bf16.mxu0 0
  %669 = vmatpush1.bf16.msra.mxu0 %v481
  %670 = vmatprep.subr.bf16.mxu0 0
  %671 = vmatpush1.bf16.msra.mxu0 %v482
  %672 = vmatprep.subr.bf16.mxu0 0
  %673 = vmatpush1.bf16.msra.mxu0 %v483
  %674 = vmatprep.subr.bf16.mxu0 0
  %675 = vmatpush1.bf16.msra.mxu0 %v484
  %676 = vmatprep.subr.bf16.mxu0 0
  %677 = vmatpush1.bf16.msra.mxu0 %v485
  %678 = vmatprep.mubr.bf16.mxu0 %v171
  %679 = vmatmul.mubr.bf16.gmra.mrb[0].mxu0 %v170
  %v680 = vpop.f32.mrb[0].mxu0
  %v681 = vadd.f32 %v641, %v680
  %v682 = vpop.f32.mrb[0].mxu0
  %v683 = vpop.f32.mrb[0].mxu0
  %v684 = vpop.f32.mrb[0].mxu0
  %685 = vdwg.mxu0
  %686 = vmatprep.subr.bf16.mxu0 0
  %687 = vmatpush1.bf16.msra.mxu0 %v486
  %688 = vmatprep.subr.bf16.mxu0 0
  %689 = vmatpush1.bf16.msra.mxu0 %v487
  %690 = vmatprep.subr.bf16.mxu0 0
  %691 = vmatpush1.bf16.msra.mxu0 %v488
  %692 = vmatprep.subr.bf16.mxu0 0
  %693 = vmatpush1.bf16.msra.mxu0 %v489
  %694 = vmatprep.subr.bf16.mxu0 0
  %695 = vmatpush1.bf16.msra.mxu0 %v490
  %696 = vmatprep.subr.bf16.mxu0 0
  %697 = vmatpush1.bf16.msra.mxu0 %v491
  %698 = vmatprep.subr.bf16.mxu0 0
  %699 = vmatpush1.bf16.msra.mxu0 %v492
  %700 = vmatprep.subr.bf16.mxu0 0
  %701 = vmatpush1.bf16.msra.mxu0 %v493
  %702 = vmatprep.subr.bf16.mxu0 0
  %703 = vmatpush1.bf16.msra.mxu0 %v494
  %704 = vmatprep.subr.bf16.mxu0 0
  %705 = vmatpush1.bf16.msra.mxu0 %v495
  %706 = vmatprep.subr.bf16.mxu0 0
  %707 = vmatpush1.bf16.msra.mxu0 %v496
  %708 = vmatprep.subr.bf16.mxu0 0
  %709 = vmatpush1.bf16.msra.mxu0 %v497
  %710 = vmatprep.subr.bf16.mxu0 0
  %711 = vmatpush1.bf16.msra.mxu0 %v498
  %712 = vmatprep.subr.bf16.mxu0 0
  %713 = vmatpush1.bf16.msra.mxu0 %v499
  %714 = vmatprep.subr.bf16.mxu0 0
  %715 = vmatpush1.bf16.msra.mxu0 %v500
  %716 = vmatprep.subr.bf16.mxu0 0
  %717 = vmatpush1.bf16.msra.mxu0 %v501
  %718 = vmatprep.mubr.bf16.mxu0 %v173
  %719 = vmatmul.mubr.bf16.gmra.mrb[0].mxu0 %v172
  %v720 = vpop.f32.mrb[0].mxu0
  %v721 = vadd.f32 %v681, %v720
  %v722 = vpop.f32.mrb[0].mxu0
  %v723 = vpop.f32.mrb[0].mxu0
  %v724 = vpop.f32.mrb[0].mxu0
  %725 = vdwg.mxu0
  %726 = vst [vmem:[%s3] sm:$0xff] %v721
  // Predicated region
  $region14: #{_lambda_.1} parent=0 // pred_check
    _
  $region15: #{_lambda_.1} parent=0 // pred_check_branch
    %728 = sbr.rel (0) target = $region17
  $region16: #{_lambda_.1} parent=0 // pred_region
    _
  $region17: #{_lambda_.1} parent=0 // pred_fallthru
    _
  // Predicated region
  $region18: #{_lambda_.1} parent=0 // pred_check
    _
  $region19: #{_lambda_.1} parent=0 // pred_check_branch
    %730 = sbr.rel (0) target = $region21
  $region20: #{_lambda_.1} parent=0 // pred_region
    _
  $region21: #{_lambda_.1} parent=0 // pred_fallthru
    _

</llo_original>
